<compile_context>
chip_gen: v7x
topology: tpu7x:2x2x1
jax: 0.10.0
libtpu: 0.0.40
codegen_flags: <defaults>
</compile_context>

<pallas_src>
import numpy as np

import jax
import jax.numpy as jnp
from jax.experimental import pallas as pl
from jax.experimental.pallas import tpu as pltpu

LN_EPS = 1e-5  # nn.LayerNorm default


def _round_up(x, m):
    return ((x + m - 1) // m) * m


def _layernorm_cols(h, gamma, beta):
    """LayerNorm over the feature axis, which is axis 0 (sublanes) in the
    transposed layout.  Biased variance, matching PyTorch semantics."""
    mean = jnp.mean(h, axis=0, keepdims=True)
    centered = h - mean
    var = jnp.mean(centered * centered, axis=0, keepdims=True)
    inv = jax.lax.rsqrt(var + LN_EPS)
    return centered * inv * gamma + beta


def actor_kernel(x_ref, w1_ref, w2_ref, w3_ref, p_ref, out_ref):
    # x_ref: (in_dim, tb)   -- batch on lanes
    # w*_ref: PyTorch layout (out_features, in_features), resident in VMEM
    # p_ref: (P, 8) slab, columns = [b1, g1, be1, b2, g2, be2, b3, 0]
    fc1 = w1_ref.shape[0]
    fc2 = w2_ref.shape[0]
    na = w3_ref.shape[0]

    # Static slices of the resident parameter slab (free).
    b1 = p_ref[:fc1, 0:1]
    g1 = p_ref[:fc1, 1:2]
    be1 = p_ref[:fc1, 2:3]
    b2 = p_ref[:fc2, 3:4]
    g2 = p_ref[:fc2, 4:5]
    be2 = p_ref[:fc2, 5:6]
    b3 = p_ref[:na, 6:7]

    x = x_ref[...]

    # fc1 -> LayerNorm -> relu        (features on sublanes, batch on lanes)
    h1 = jnp.dot(w1_ref[...], x, preferred_element_type=jnp.float32) + b1
    h1 = jnp.maximum(_layernorm_cols(h1, g1, be1), 0.0)

    # fc2 -> LayerNorm -> relu
    h2 = jnp.dot(w2_ref[...], h1, preferred_element_type=jnp.float32) + b2
    h2 = jnp.maximum(_layernorm_cols(h2, g2, be2), 0.0)

    # mu -> sigmoid   (lane-dense (n_actions, tb) store)
    mu = jnp.dot(w3_ref[...], h2, preferred_element_type=jnp.float32) + b3
    out_ref[...] = jax.nn.sigmoid(mu)


def _pack_vectors(vecs, height):
    """Pack 1-D parameter vectors as columns of a (height, 8) f32 slab."""
    slab = jnp.zeros((height, 8), jnp.float32)
    for i, v in enumerate(vecs):
        slab = slab.at[: v.shape[0], i].set(v.astype(jnp.float32))
    return slab


def actor_forward(state, params, *, block_b=2048):
    """Fused DDPG-actor forward. state: (B, input_dim) f32 -> (B, n_actions) f32."""
    (w1, b1, g1, be1, w2, b2, g2, be2, w3, b3) = params
    B, in_dim = state.shape
    fc1_dims, fc2_dims, n_actions = w1.shape[0], w2.shape[0], w3.shape[0]

    # Layout plumbing: batch onto the lane axis (lane-dense input & output).
    state_t = state.T                                   # (in_dim, B)

    # Pack the seven tiny vectors into one resident slab.
    P = max(fc1_dims, fc2_dims, n_actions)
    pslab = _pack_vectors((b1, g1, be1, b2, g2, be2, b3), P)

    # ---- Batch tile selection -------------------------------------------
    # B <= block_b: single tile equal to the full array (no padding, one step).
    # B  > block_b: multiple-of-128 lane tiles; tile count nudged even so both
    #               v7x TensorCores get work; ragged tail handled by Pallas
    #               (reads padded, writes clipped) -- no jnp.pad HBM copy.
    if B <= block_b:
        tb, n_tiles = B, 1
    else:
        n_tiles = pl.cdiv(B, block_b)
        if n_tiles % 2 == 1:
            n_tiles += 1
        tb = _round_up(pl.cdiv(B, n_tiles), 128)
        n_tiles = pl.cdiv(B, tb)
        if n_tiles == 1:
            tb = B

    batch_spec = lambda d: pl.BlockSpec((d, tb), lambda i: (0, i))    # tiled over grid
    resident = lambda a: pl.BlockSpec(a.shape, lambda i: (0, 0))      # stays in VMEM

    # Advisory cost estimate (kernel is overhead/DMA-bound, not compute-bound).
    flops = 2 * B * (in_dim * fc1_dims + fc1_dims * fc2_dims + fc2_dims * n_actions)
    transcendentals = B * (n_actions + 2)  # sigmoid exp per action + 2 rsqrt per row
    param_bytes = sum(int(p.size) * p.dtype.itemsize
                      for p in (w1, w2, w3)) + int(pslab.size) * 4
    bytes_accessed = (B * in_dim * 4) + param_bytes + (B * n_actions * 4)

    out_t = pl.pallas_call(
        actor_kernel,
        out_shape=jax.ShapeDtypeStruct((n_actions, B), jnp.float32),
        grid=(n_tiles,),
        in_specs=[
            batch_spec(in_dim),
            resident(w1), resident(w2), resident(w3), resident(pslab),
        ],
        out_specs=batch_spec(n_actions),
        compiler_params=pltpu.CompilerParams(
            dimension_semantics=("parallel",),  # shard batch tiles across TCs on v7x
        ),
        cost_estimate=pl.CostEstimate(
            flops=flops,
            transcendentals=transcendentals,
            bytes_accessed=bytes_accessed,
        ),
    )(state_t, w1, w2, w3, pslab)

    return out_t.T                                       # (B, n_actions)


def init_params(key, input_dim, fc1_dims, fc2_dims, n_actions):
    """Deterministic init matching the PyTorch module's __init__ bounds.

    The reference uses weight.size()[0] (== out_features for nn.Linear) for the
    uniform bound, so f1 = 1/sqrt(fc1_dims), f2 = 1/sqrt(fc2_dims), f3 = 0.003.
    Weights are stored in PyTorch nn.Linear layout (out_features, in_features).
    """
    ks = jax.random.split(key, 6)
    f1 = 1.0 / np.sqrt(fc1_dims)
    f2 = 1.0 / np.sqrt(fc2_dims)
    f3 = 0.003

    w1 = jax.random.uniform(ks[0], (fc1_dims, input_dim), jnp.float32, -f1, f1)
    b1 = jax.random.uniform(ks[1], (fc1_dims,), jnp.float32, -f1, f1)
    g1 = jnp.ones((fc1_dims,), jnp.float32)    # LayerNorm weight (default init)
    be1 = jnp.zeros((fc1_dims,), jnp.float32)  # LayerNorm bias

    w2 = jax.random.uniform(ks[2], (fc2_dims, fc1_dims), jnp.float32, -f2, f2)
    b2 = jax.random.uniform(ks[3], (fc2_dims,), jnp.float32, -f2, f2)
    g2 = jnp.ones((fc2_dims,), jnp.float32)
    be2 = jnp.zeros((fc2_dims,), jnp.float32)

    w3 = jax.random.uniform(ks[4], (n_actions, fc2_dims), jnp.float32, -f3, f3)
    b3 = jax.random.uniform(ks[5], (n_actions,), jnp.float32, -f3, f3)

    return (w1, b1, g1, be1, w2, b2, g2, be2, w3, b3)


def _reference(x, p):
    (w1, b1, g1, be1, w2, b2, g2, be2, w3, b3) = p

    def ln(h, g, b):
        m = h.mean(-1, keepdims=True)
        v = ((h - m) ** 2).mean(-1, keepdims=True)
        return (h - m) * jax.lax.rsqrt(v + LN_EPS) * g + b

    h = jnp.maximum(ln(x @ w1.T + b1, g1, be1), 0.0)
    h = jnp.maximum(ln(h @ w2.T + b2, g2, be2), 0.0)
    return jax.nn.sigmoid(h @ w3.T + b3)


if __name__ == "__main__":
    key = jax.random.PRNGKey(0)
    kp, kx1, kx2, kx3 = jax.random.split(key, 4)

    input_dim, fc1_dims, fc2_dims, n_actions = 8, 32, 32, 4
    params = init_params(kp, input_dim, fc1_dims, fc2_dims, n_actions)

    # Case 1: typical DDPG batch -> single tile covers the whole batch.
    B1 = 256
    state1 = jax.random.normal(kx1, (B1, input_dim), jnp.float32)
    out1 = jax.block_until_ready(actor_forward(state1, params))
    assert out1.shape == (B1, n_actions)
    assert jnp.allclose(out1, _reference(state1, params), atol=1e-5, rtol=1e-5)

    # Case 2: tiny ragged batch (block == full array dims, no padding).
    B2 = 6
    state2 = jax.random.normal(kx2, (B2, input_dim), jnp.float32)
    out2 = jax.block_until_ready(actor_forward(state2, params))
    assert out2.shape == (B2, n_actions)
    assert jnp.allclose(out2, _reference(state2, params), atol=1e-5, rtol=1e-5)

    # Case 3: multi-tile grid with a partial tail block (exercises clipping path).
    B3 = 300
    state3 = jax.random.normal(kx3, (B3, input_dim), jnp.float32)
    out3 = jax.block_until_ready(actor_forward(state3, params, block_b=128))
    assert out3.shape == (B3, n_actions)
    assert jnp.allclose(out3, _reference(state3, params), atol=1e-5, rtol=1e-5)

    # TODO(synk): at very small batches the dominant cost is pallas_call launch;
    # fuse this kernel into the surrounding training/inference step for real wins.
    print("KERNEL_OK")
</pallas_src>

<mosaic_0001>
module attributes {stable_mosaic.version = 11 : i64} {
  func.func @actor_kernel(%arg0: i32, %arg1: memref<8x256xf32, #tpu.memory_space<vmem>>, %arg2: memref<32x8xf32, #tpu.memory_space<vmem>>, %arg3: memref<32x32xf32, #tpu.memory_space<vmem>>, %arg4: memref<4x32xf32, #tpu.memory_space<vmem>>, %arg5: memref<32x8xf32, #tpu.memory_space<vmem>>, %arg6: memref<4x256xf32, #tpu.memory_space<vmem>>) attributes {dimension_semantics = [#tpu.dimension_semantics<parallel>], iteration_bounds = array<i64: 1>, scalar_prefetch = 0 : i64, scratch_operands = 0 : i64, tpu.core_type = #tpu.core_type<tc>, window_params = [{transform_indices = @transform_0, window_bounds = array<i64: 8, 256>}, {pipeline_mode = #tpu.pipeline_mode<synchronous>, transform_indices = @transform_1, window_bounds = array<i64: 32, 8>}, {pipeline_mode = #tpu.pipeline_mode<synchronous>, transform_indices = @transform_2, window_bounds = array<i64: 32, 32>}, {pipeline_mode = #tpu.pipeline_mode<synchronous>, transform_indices = @transform_3, window_bounds = array<i64: 4, 32>}, {pipeline_mode = #tpu.pipeline_mode<synchronous>, transform_indices = @transform_4, window_bounds = array<i64: 32, 8>}, {transform_indices = @transform_5, window_bounds = array<i64: 4, 256>}]} {
    %c0 = arith.constant 0 : index
    %c0_0 = arith.constant 0 : index
    %0 = vector.load %arg5[%c0, %c0_0] : memref<32x8xf32, #tpu.memory_space<vmem>>, vector<32x1xf32>
    %c0_1 = arith.constant 0 : index
    %c1 = arith.constant 1 : index
    %1 = vector.load %arg5[%c0_1, %c1] : memref<32x8xf32, #tpu.memory_space<vmem>>, vector<32x1xf32>
    %c0_2 = arith.constant 0 : index
    %c2 = arith.constant 2 : index
    %2 = vector.load %arg5[%c0_2, %c2] : memref<32x8xf32, #tpu.memory_space<vmem>>, vector<32x1xf32>
    %c0_3 = arith.constant 0 : index
    %c3 = arith.constant 3 : index
    %3 = vector.load %arg5[%c0_3, %c3] : memref<32x8xf32, #tpu.memory_space<vmem>>, vector<32x1xf32>
    %c0_4 = arith.constant 0 : index
    %c4 = arith.constant 4 : index
    %4 = vector.load %arg5[%c0_4, %c4] : memref<32x8xf32, #tpu.memory_space<vmem>>, vector<32x1xf32>
    %c0_5 = arith.constant 0 : index
    %c5 = arith.constant 5 : index
    %5 = vector.load %arg5[%c0_5, %c5] : memref<32x8xf32, #tpu.memory_space<vmem>>, vector<32x1xf32>
    %c0_6 = arith.constant 0 : index
    %c6 = arith.constant 6 : index
    %6 = vector.load %arg5[%c0_6, %c6] : memref<32x8xf32, #tpu.memory_space<vmem>>, vector<4x1xf32>
    %c0_7 = arith.constant 0 : index
    %c0_8 = arith.constant 0 : index
    %7 = vector.load %arg1[%c0_7, %c0_8] : memref<8x256xf32, #tpu.memory_space<vmem>>, vector<8x256xf32>
    %c0_9 = arith.constant 0 : index
    %c0_10 = arith.constant 0 : index
    %8 = vector.load %arg2[%c0_9, %c0_10] : memref<32x8xf32, #tpu.memory_space<vmem>>, vector<32x8xf32>
    %cst = arith.constant dense<0.000000e+00> : vector<32x256xf32>
    %9 = tpu.matmul %8, %7, %cst {dimension_numbers = #tpu.dot_dimension_numbers<[1], [0], [0], [1], [0, 0, 1, 1], [], []>} : vector<32x8xf32>, vector<8x256xf32>, vector<32x256xf32> -> vector<32x256xf32>
    %10 = vector.broadcast %0 : vector<32x1xf32> to vector<32x256xf32>
    %11 = arith.addf %9, %10 : vector<32x256xf32>
    %cst_11 = arith.constant dense<0.000000e+00> : vector<256xf32>
    %12 = vector.multi_reduction <add>, %11, %cst_11 [0] : vector<32x256xf32> to vector<256xf32>
    %13 = vector.shape_cast %12 : vector<256xf32> to vector<1x256xf32>
    %cst_12 = arith.constant 3.200000e+01 : f32
    %14 = vector.broadcast %cst_12 : f32 to vector<1x256xf32>
    %15 = arith.divf %13, %14 : vector<1x256xf32>
    %16 = vector.broadcast %15 : vector<1x256xf32> to vector<32x256xf32>
    %17 = arith.subf %11, %16 : vector<32x256xf32>
    %18 = arith.mulf %17, %17 : vector<32x256xf32>
    %cst_13 = arith.constant dense<0.000000e+00> : vector<256xf32>
    %19 = vector.multi_reduction <add>, %18, %cst_13 [0] : vector<32x256xf32> to vector<256xf32>
    %20 = vector.shape_cast %19 : vector<256xf32> to vector<1x256xf32>
    %cst_14 = arith.constant 3.200000e+01 : f32
    %21 = vector.broadcast %cst_14 : f32 to vector<1x256xf32>
    %22 = arith.divf %20, %21 : vector<1x256xf32>
    %cst_15 = arith.constant 9.99999974E-6 : f32
    %23 = vector.broadcast %cst_15 : f32 to vector<1x256xf32>
    %24 = arith.addf %22, %23 : vector<1x256xf32>
    %25 = math.rsqrt %24 : vector<1x256xf32>
    %26 = vector.broadcast %25 : vector<1x256xf32> to vector<32x256xf32>
    %27 = arith.mulf %17, %26 : vector<32x256xf32>
    %28 = vector.broadcast %1 : vector<32x1xf32> to vector<32x256xf32>
    %29 = arith.mulf %27, %28 : vector<32x256xf32>
    %30 = vector.broadcast %2 : vector<32x1xf32> to vector<32x256xf32>
    %31 = arith.addf %29, %30 : vector<32x256xf32>
    %cst_16 = arith.constant 0.000000e+00 : f32
    %32 = vector.broadcast %cst_16 : f32 to vector<32x256xf32>
    %33 = arith.maximumf %31, %32 : vector<32x256xf32>
    %c0_17 = arith.constant 0 : index
    %c0_18 = arith.constant 0 : index
    %34 = vector.load %arg3[%c0_17, %c0_18] : memref<32x32xf32, #tpu.memory_space<vmem>>, vector<32x32xf32>
    %cst_19 = arith.constant dense<0.000000e+00> : vector<32x256xf32>
    %35 = tpu.matmul %34, %33, %cst_19 {dimension_numbers = #tpu.dot_dimension_numbers<[1], [0], [0], [1], [0, 0, 1, 1], [], []>} : vector<32x32xf32>, vector<32x256xf32>, vector<32x256xf32> -> vector<32x256xf32>
    %36 = vector.broadcast %3 : vector<32x1xf32> to vector<32x256xf32>
    %37 = arith.addf %35, %36 : vector<32x256xf32>
    %cst_20 = arith.constant dense<0.000000e+00> : vector<256xf32>
    %38 = vector.multi_reduction <add>, %37, %cst_20 [0] : vector<32x256xf32> to vector<256xf32>
    %39 = vector.shape_cast %38 : vector<256xf32> to vector<1x256xf32>
    %cst_21 = arith.constant 3.200000e+01 : f32
    %40 = vector.broadcast %cst_21 : f32 to vector<1x256xf32>
    %41 = arith.divf %39, %40 : vector<1x256xf32>
    %42 = vector.broadcast %41 : vector<1x256xf32> to vector<32x256xf32>
    %43 = arith.subf %37, %42 : vector<32x256xf32>
    %44 = arith.mulf %43, %43 : vector<32x256xf32>
    %cst_22 = arith.constant dense<0.000000e+00> : vector<256xf32>
    %45 = vector.multi_reduction <add>, %44, %cst_22 [0] : vector<32x256xf32> to vector<256xf32>
    %46 = vector.shape_cast %45 : vector<256xf32> to vector<1x256xf32>
    %cst_23 = arith.constant 3.200000e+01 : f32
    %47 = vector.broadcast %cst_23 : f32 to vector<1x256xf32>
    %48 = arith.divf %46, %47 : vector<1x256xf32>
    %cst_24 = arith.constant 9.99999974E-6 : f32
    %49 = vector.broadcast %cst_24 : f32 to vector<1x256xf32>
    %50 = arith.addf %48, %49 : vector<1x256xf32>
    %51 = math.rsqrt %50 : vector<1x256xf32>
    %52 = vector.broadcast %51 : vector<1x256xf32> to vector<32x256xf32>
    %53 = arith.mulf %43, %52 : vector<32x256xf32>
    %54 = vector.broadcast %4 : vector<32x1xf32> to vector<32x256xf32>
    %55 = arith.mulf %53, %54 : vector<32x256xf32>
    %56 = vector.broadcast %5 : vector<32x1xf32> to vector<32x256xf32>
    %57 = arith.addf %55, %56 : vector<32x256xf32>
    %cst_25 = arith.constant 0.000000e+00 : f32
    %58 = vector.broadcast %cst_25 : f32 to vector<32x256xf32>
    %59 = arith.maximumf %57, %58 : vector<32x256xf32>
    %c0_26 = arith.constant 0 : index
    %c0_27 = arith.constant 0 : index
    %60 = vector.load %arg4[%c0_26, %c0_27] : memref<4x32xf32, #tpu.memory_space<vmem>>, vector<4x32xf32>
    %cst_28 = arith.constant dense<0.000000e+00> : vector<4x256xf32>
    %61 = tpu.matmul %60, %59, %cst_28 {dimension_numbers = #tpu.dot_dimension_numbers<[1], [0], [0], [1], [0, 0, 1, 1], [], []>} : vector<4x32xf32>, vector<32x256xf32>, vector<4x256xf32> -> vector<4x256xf32>
    %62 = vector.broadcast %6 : vector<4x1xf32> to vector<4x256xf32>
    %63 = arith.addf %61, %62 : vector<4x256xf32>
    %64 = arith.negf %63 : vector<4x256xf32>
    %65 = math.exp %64 : vector<4x256xf32>
    %cst_29 = arith.constant 1.000000e+00 : f32
    %66 = vector.broadcast %cst_29 : f32 to vector<4x256xf32>
    %67 = arith.addf %66, %65 : vector<4x256xf32>
    %68 = arith.divf %66, %67 : vector<4x256xf32>
    %c0_30 = arith.constant 0 : index
    %c0_31 = arith.constant 0 : index
    %69 = vector.load %arg6[%c0_30, %c0_31] : memref<4x256xf32, #tpu.memory_space<vmem>>, vector<4x256xf32>
    tpu.vector_store %arg6[%c0_30, %c0_31], %68 {strides = array<i32>} : memref<4x256xf32, #tpu.memory_space<vmem>>, vector<4x256xf32>,
    return
  }
  func.func @transform_0(%arg0: i32) -> (i32, i32) {
    %c0_i32 = arith.constant 0 : i32
    %c0_i32_0 = arith.constant 0 : i32
    return %c0_i32, %arg0 : i32, i32
  }
  func.func @transform_1(%arg0: i32) -> (i32, i32) {
    %c0_i32 = arith.constant 0 : i32
    %c0_i32_0 = arith.constant 0 : i32
    %c0_i32_1 = arith.constant 0 : i32
    return %c0_i32, %c0_i32_0 : i32, i32
  }
  func.func @transform_2(%arg0: i32) -> (i32, i32) {
    %c0_i32 = arith.constant 0 : i32
    %c0_i32_0 = arith.constant 0 : i32
    %c0_i32_1 = arith.constant 0 : i32
    return %c0_i32, %c0_i32_0 : i32, i32
  }
  func.func @transform_3(%arg0: i32) -> (i32, i32) {
    %c0_i32 = arith.constant 0 : i32
    %c0_i32_0 = arith.constant 0 : i32
    %c0_i32_1 = arith.constant 0 : i32
    return %c0_i32, %c0_i32_0 : i32, i32
  }
  func.func @transform_4(%arg0: i32) -> (i32, i32) {
    %c0_i32 = arith.constant 0 : i32
    %c0_i32_0 = arith.constant 0 : i32
    %c0_i32_1 = arith.constant 0 : i32
    return %c0_i32, %c0_i32_0 : i32, i32
  }
  func.func @transform_5(%arg0: i32) -> (i32, i32) {
    %c0_i32 = arith.constant 0 : i32
    %c0_i32_0 = arith.constant 0 : i32
    return %c0_i32, %arg0 : i32, i32
  }
}

</mosaic_0001>

<llo_original>
// kernel: tpu_custom_call.1
$region0: #{tpu_custom_call.1}
  #allocation0 [shape = 'u32[]', space=smem, size = 0x4, offset = 0x4, fixed_abs, tag = 'smem constant byte address 0x4 - core index']
  #allocation1 [shape = 'u32[144,128]{1,0:T(1,128)}', space=vmem, size = 0x12000, scoped, tag = 'internal scratch']
  %s0 = inlined_call_operand.vmem [shape: f32[8,256], index: 0, kind: input, shape index: {}]
  %s1 = inlined_call_operand.vmem [shape: f32[32,8], index: 1, kind: input, shape index: {}]
  %s2 = inlined_call_operand.vmem [shape: f32[32,32], index: 2, kind: input, shape index: {}]
  %s3 = inlined_call_operand.vmem [shape: f32[4,32], index: 3, kind: input, shape index: {}]
  %s4 = inlined_call_operand.vmem [shape: f32[32,8], index: 4, kind: input, shape index: {}]
  %s5 = inlined_call_operand.hbm [shape: f32[4,256], index: 5, kind: output, shape index: {}]
  %s6 = sld [smem:[#allocation0]]
  $region30: #{tpu_custom_call.1} parent=0
    _
  %s8 = ssub.s32 1, %s6
  %s9 = scalar_select 0, %s8, %s6
  $region1: #{tpu_custom_call.1} parent=0
    #allocation2 [shape = 'u8[4096]{0}', space=vmem, size = 0x1000, scoped, tag = 'output window, operand 0, single buffered']
    #allocation3 [shape = 's32[1]{0}', space=sflag, size = 0x4, scoped, tag = 'scoped memory for tpu_custom_call.1']
    %10 = vsyncpa [#allocation3], 0
    // Predicated region
    $region2: #{tpu_custom_call.1} parent=1 // pred_check
      _
    $region3: #{tpu_custom_call.1} parent=1 // pred_check_branch
      %12 = sbr.rel (0) target = $region5
    $region4: #{tpu_custom_call.1} parent=1 // pred_region
      _
    $region5: #{tpu_custom_call.1} parent=1 // pred_fallthru
      _
    // Predicated region
    $region6: #{tpu_custom_call.1} parent=1 // pred_check
      _
    $region7: #{tpu_custom_call.1} parent=1 // pred_check_branch
      %14 = sbr.rel (0) target = $region9
    $region8: #{tpu_custom_call.1} parent=1 // pred_region
      _
    $region9: #{tpu_custom_call.1} parent=1 // pred_fallthru
      _
    // Predicated region
    $region10: #{tpu_custom_call.1} parent=1 // pred_check
      _
    $region11: #{tpu_custom_call.1} parent=1 // pred_check_branch
      %16 = sbr.rel (0) target = $region13
    $region12: #{tpu_custom_call.1} parent=1 // pred_region
      _
    $region13: #{tpu_custom_call.1} parent=1 // pred_fallthru
      _
    // Predicated region
    $region14: #{tpu_custom_call.1} parent=1 // pred_check
      _
    $region15: #{tpu_custom_call.1} parent=1 // pred_check_branch
      %18 = sbr.rel (0) target = $region17
    $region16: #{tpu_custom_call.1} parent=1 // pred_region
      _
    $region17: #{tpu_custom_call.1} parent=1 // pred_fallthru
      _
    // Predicated region
    $region18: #{tpu_custom_call.1} parent=1 // pred_check
      _
    $region19: #{tpu_custom_call.1} parent=1 // pred_check_branch
      %20 = sbr.rel (0) target = $region21
    $region20: #{tpu_custom_call.1} parent=1 // pred_region
      _
    $region21: #{tpu_custom_call.1} parent=1 // pred_fallthru
      _
    %v21 = vld [vmem:[%s4] sm:$0xff]
    %v22 = vld [vmem:[%s4 + $0x8] sm:$0xff]
    %v23 = vld [vmem:[%s4 + $0x10] sm:$0xff]
    %v24 = vld [vmem:[%s4 + $0x18] sm:$0xff]
    %v25 = vld [vmem:[%s4] sm:$0xf]
    %v26 = vld [vmem:[%s0] sm:$0xff]
    %v27 = vld [vmem:[%s0 + $0x8] sm:$0xff]
    %v28 = vld [vmem:[%s1] sm:$0xff]
    %v29 = vld [vmem:[%s1 + $0x8] sm:$0xff]
    %v30 = vld [vmem:[%s1 + $0x10] sm:$0xff]
    %v31 = vld [vmem:[%s1 + $0x18] sm:$0xff]
    %33 = vset.pattern.permute.xlu0 0
    %34 = vperm.xlu0 %33, %v21
    %v35 = vpop.permute.xlu0 %34
    %38 = vset.pattern.permute.xlu0 0
    %39 = vperm.xlu0 %38, %v22
    %v40 = vpop.permute.xlu0 %39
    %43 = vset.pattern.permute.xlu0 0
    %44 = vperm.xlu0 %43, %v23
    %v45 = vpop.permute.xlu0 %44
    %48 = vset.pattern.permute.xlu0 0
    %49 = vperm.xlu0 %48, %v24
    %v50 = vpop.permute.xlu0 %49
    %vm52 = vcmask 64512
    %v54 = vsel %vm52, %v28, 0
    %v57 = vsel %vm52, %v29, 0
    %v60 = vsel %vm52, %v30, 0
    %v63 = vsel %vm52, %v31, 0
    %65 = vmatprep.subr.mxu0 %v27
    %66 = vmatpush1.msra.mxu0 %v26
    %67 = vmatprep.subr.mxu0 0.0
    %68 = vmatpush1.msra.mxu0 0.0
    %69 = vmatprep.subr.mxu0 0.0
    %70 = vmatpush1.msra.mxu0 0.0
    %71 = vmatprep.subr.mxu0 0.0
    %72 = vmatpush1.msra.mxu0 0.0
    %73 = vmatprep.subr.mxu0 0.0
    %74 = vmatpush1.msra.mxu0 0.0
    %75 = vmatprep.subr.mxu0 0.0
    %76 = vmatpush1.msra.mxu0 0.0
    %77 = vmatprep.subr.mxu0 0.0
    %78 = vmatpush1.msra.mxu0 0.0
    %79 = vmatprep.subr.mxu0 0.0
    %80 = vmatpush1.msra.mxu0 0.0
    %81 = vmatprep.subr.mxu0 0.0
    %82 = vmatpush1.msra.mxu0 0.0
    %83 = vmatprep.subr.mxu0 0.0
    %84 = vmatpush1.msra.mxu0 0.0
    %85 = vmatprep.subr.mxu0 0.0
    %86 = vmatpush1.msra.mxu0 0.0
    %87 = vmatprep.subr.mxu0 0.0
    %88 = vmatpush1.msra.mxu0 0.0
    %89 = vmatprep.subr.mxu0 0.0
    %90 = vmatpush1.msra.mxu0 0.0
    %91 = vmatprep.subr.mxu0 0.0
    %92 = vmatpush1.msra.mxu0 0.0
    %93 = vmatprep.subr.mxu0 0.0
    %94 = vmatpush1.msra.mxu0 0.0
    %95 = vmatprep.subr.mxu0 0.0
    %96 = vmatpush1.msra.mxu0 0.0
    %97 = vmatprep.subr.mxu0 0.0
    %98 = vmatpush1.msra.mxu0 0.0
    %99 = vmatprep.subr.mxu0 0.0
    %100 = vmatpush1.msra.mxu0 0.0
    %101 = vmatprep.subr.mxu0 0.0
    %102 = vmatpush1.msra.mxu0 0.0
    %103 = vmatprep.subr.mxu0 0.0
    %104 = vmatpush1.msra.mxu0 0.0
    %105 = vmatprep.subr.mxu0 0.0
    %106 = vmatpush1.msra.mxu0 0.0
    %107 = vmatprep.subr.mxu0 0.0
    %108 = vmatpush1.msra.mxu0 0.0
    %109 = vmatprep.subr.mxu0 0.0
    %110 = vmatpush1.msra.mxu0 0.0
    %111 = vmatprep.subr.mxu0 0.0
    %112 = vmatpush1.msra.mxu0 0.0
    %113 = vmatprep.subr.mxu0 0.0
    %114 = vmatpush1.msra.mxu0 0.0
    %115 = vmatprep.subr.mxu0 0.0
    %116 = vmatpush1.msra.mxu0 0.0
    %117 = vmatprep.subr.mxu0 0.0
    %118 = vmatpush1.msra.mxu0 0.0
    %119 = vmatprep.subr.mxu0 0.0
    %120 = vmatpush1.msra.mxu0 0.0
    %121 = vmatprep.subr.mxu0 0.0
    %122 = vmatpush1.msra.mxu0 0.0
    %123 = vmatprep.subr.mxu0 0.0
    %124 = vmatpush1.msra.mxu0 0.0
    %125 = vmatprep.subr.mxu0 0.0
    %126 = vmatpush1.msra.mxu0 0.0
    %127 = vmatprep.subr.mxu0 0.0
    %128 = vmatpush1.msra.mxu0 0.0
    %129 = vmatprep.mubr.f32.mxu0 0.0
    %130 = vmatmul.mubr.f32.gmra.mrb[0].mxu0 %v54
    %v131 = vpop.f32.mrb[0].mxu0
    %v132 = vadd.f32 %v35, %v131
    %v133 = vpop.f32.mrb[0].mxu0
    %v134 = vadd.f32 %v35, %v133
    %135 = vmatprep.mubr.f32.mxu0 0.0
    %136 = vmatmul.mubr.f32.gmra.mrb[0].mxu0 %v57
    %v137 = vpop.f32.mrb[0].mxu0
    %v138 = vadd.f32 %v40, %v137
    %v139 = vpop.f32.mrb[0].mxu0
    %v140 = vadd.f32 %v40, %v139
    %141 = vmatprep.mubr.f32.mxu0 0.0
    %142 = vmatmul.mubr.f32.gmra.mrb[0].mxu0 %v60
    %v143 = vpop.f32.mrb[0].mxu0
    %v144 = vadd.f32 %v45, %v143
    %v145 = vpop.f32.mrb[0].mxu0
    %v146 = vadd.f32 %v45, %v145
    %147 = vmatprep.mubr.f32.mxu0 0.0
    %148 = vmatmul.mubr.f32.gmra.mrb[0].mxu0 %v63
    %v149 = vpop.f32.mrb[0].mxu0
    %v150 = vadd.f32 %v50, %v149
    %v151 = vpop.f32.mrb[0].mxu0
    %v152 = vadd.f32 %v50, %v151
    %153 = vdwg.mxu0
    %v154 = vadd.f32 %v132, %v138
    %v155 = vadd.f32 %v154, %v144
    %v156 = vadd.f32 %v155, %v150
    %v157 = vrot.slane %v156, 4
    %v158 = vadd.f32 %v156, %v157
    %v159 = vrot.slane %v158, 2
    %v160 = vadd.f32 %v158, %v159
    %v161 = vrot.slane %v160, 1
    %v162 = vadd.f32 %v160, %v161
    %v163 = vadd.f32 %v134, %v140
    %v164 = vadd.f32 %v163, %v146
    %v165 = vadd.f32 %v164, %v152
    %v166 = vrot.slane %v165, 4
    %v167 = vadd.f32 %v165, %v166
    %v168 = vrot.slane %v167, 2
    %v169 = vadd.f32 %v167, %v168
    %v170 = vrot.slane %v169, 1
    %v171 = vadd.f32 %v169, %v170
    %v172 = vrcp.pop 32.0
    %v173 = vmul.f32 %v162, %v172
    %v174 = vmul.f32 %v171, %v172
    %v175 = vsub.f32 %v132, %v173
    %v176 = vsub.f32 %v134, %v174
    %v177 = vsub.f32 %v138, %v173
    %v178 = vsub.f32 %v140, %v174
    %v179 = vsub.f32 %v144, %v173
    %v180 = vsub.f32 %v146, %v174
    %v181 = vsub.f32 %v150, %v173
    %v182 = vsub.f32 %v152, %v174
    %v183 = vmul.f32 %v175, %v175
    %v184 = vmul.f32 %v176, %v176
    %v185 = vmul.f32 %v177, %v177
    %v186 = vmul.f32 %v178, %v178
    %v187 = vmul.f32 %v179, %v179
    %v188 = vmul.f32 %v180, %v180
    %v189 = vmul.f32 %v181, %v181
    %v190 = vmul.f32 %v182, %v182
    %v191 = vadd.f32 %v183, %v185
    %v192 = vadd.f32 %v191, %v187
    %v193 = vadd.f32 %v192, %v189
    %v194 = vrot.slane %v193, 4
    %v195 = vadd.f32 %v193, %v194
    %v196 = vrot.slane %v195, 2
    %v197 = vadd.f32 %v195, %v196
    %v198 = vrot.slane %v197, 1
    %v199 = vadd.f32 %v197, %v198
    %v200 = vadd.f32 %v184, %v186
    %v201 = vadd.f32 %v200, %v188
    %v202 = vadd.f32 %v201, %v190
    %v203 = vrot.slane %v202, 4
    %v204 = vadd.f32 %v202, %v203
    %v205 = vrot.slane %v204, 2
    %v206 = vadd.f32 %v204, %v205
    %v207 = vrot.slane %v206, 1
    %v208 = vadd.f32 %v206, %v207
    %v209 = vmul.f32 %v199, %v172
    %v210 = vmul.f32 %v208, %v172
    %v211 = vadd.f32 %v209, 1e-05
    %v212 = vadd.f32 %v210, 1e-05
    %v213 = vrsqrt.pop %v211
    %v214 = vrsqrt.pop %v212
    %v215 = vmul.f32 %v175, %v213
    %v216 = vmul.f32 %v176, %v214
    %v217 = vmul.f32 %v177, %v213
    %v218 = vmul.f32 %v178, %v214
    %v219 = vmul.f32 %v179, %v213
    %v220 = vmul.f32 %v180, %v214
    %v221 = vmul.f32 %v181, %v213
    %v222 = vmul.f32 %v182, %v214
    %223 = vset.pattern.permute.xlu0 1
    %224 = vperm.xlu0 %223, %v21
    %v225 = vpop.permute.xlu0 %224
    %227 = vset.pattern.permute.xlu0 1
    %228 = vperm.xlu0 %227, %v22
    %v229 = vpop.permute.xlu0 %228
    %231 = vset.pattern.permute.xlu0 1
    %232 = vperm.xlu0 %231, %v23
    %v233 = vpop.permute.xlu0 %232
    %235 = vset.pattern.permute.xlu0 1
    %236 = vperm.xlu0 %235, %v24
    %v237 = vpop.permute.xlu0 %236
    %v239 = vmul.f32 %v215, %v225
    %v240 = vmul.f32 %v216, %v225
    %v241 = vmul.f32 %v217, %v229
    %v242 = vmul.f32 %v218, %v229
    %v243 = vmul.f32 %v219, %v233
    %v244 = vmul.f32 %v220, %v233
    %v245 = vmul.f32 %v221, %v237
    %v246 = vmul.f32 %v222, %v237
    %247 = vset.pattern.permute.xlu0 2
    %248 = vperm.xlu0 %247, %v21
    %v249 = vpop.permute.xlu0 %248
    %251 = vset.pattern.permute.xlu0 2
    %252 = vperm.xlu0 %251, %v22
    %v253 = vpop.permute.xlu0 %252
    %255 = vset.pattern.permute.xlu0 2
    %256 = vperm.xlu0 %255, %v23
    %v257 = vpop.permute.xlu0 %256
    %259 = vset.pattern.permute.xlu0 2
    %260 = vperm.xlu0 %259, %v24
    %v261 = vpop.permute.xlu0 %260
    %v263 = vadd.f32 %v239, %v249
    %v264 = vadd.f32 %v240, %v249
    %v265 = vadd.f32 %v241, %v253
    %v266 = vadd.f32 %v242, %v253
    %v267 = vadd.f32 %v243, %v257
    %v268 = vadd.f32 %v244, %v257
    %v269 = vadd.f32 %v245, %v261
    %v270 = vadd.f32 %v246, %v261
    %v271 = vmax.f32 %v263, 0.0
    %v272 = vmax.f32 %v264, 0.0
    %v273 = vmax.f32 %v265, 0.0
    %v274 = vmax.f32 %v266, 0.0
    %v275 = vmax.f32 %v267, 0.0
    %v276 = vmax.f32 %v268, 0.0
    %v277 = vmax.f32 %v269, 0.0
    %v278 = vmax.f32 %v270, 0.0
    %v279 = vld [vmem:[%s2] sm:$0xff]
    %v280 = vld [vmem:[%s2 + $0x8] sm:$0xff]
    %v281 = vld [vmem:[%s2 + $0x10] sm:$0xff]
    %v282 = vld [vmem:[%s2 + $0x18] sm:$0xff]
    %283 = vset.pattern.permute.xlu0 3
    %284 = vperm.xlu0 %283, %v21
    %v285 = vpop.permute.xlu0 %284
    %287 = vset.pattern.permute.xlu0 3
    %288 = vperm.xlu0 %287, %v22
    %v289 = vpop.permute.xlu0 %288
    %291 = vset.pattern.permute.xlu0 3
    %292 = vperm.xlu0 %291, %v23
    %v293 = vpop.permute.xlu0 %292
    %295 = vset.pattern.permute.xlu0 3
    %296 = vperm.xlu0 %295, %v24
    %v297 = vpop.permute.xlu0 %296
    %vm299 = vcmask 261120
    %v301 = vsel %vm299, %v279, 0
    %v304 = vsel %vm299, %v280, 0
    %v307 = vsel %vm299, %v281, 0
    %v310 = vsel %vm299, %v282, 0
    %312 = vmatprep.subr.mxu0 %v272
    %313 = vmatpush1.msra.mxu0 %v271
    %314 = vmatprep.subr.mxu0 %v274
    %315 = vmatpush1.msra.mxu0 %v273
    %316 = vmatprep.subr.mxu0 %v276
    %317 = vmatpush1.msra.mxu0 %v275
    %318 = vmatprep.subr.mxu0 %v278
    %319 = vmatpush1.msra.mxu0 %v277
    %320 = vmatprep.subr.mxu0 0.0
    %321 = vmatpush1.msra.mxu0 0.0
    %322 = vmatprep.subr.mxu0 0.0
    %323 = vmatpush1.msra.mxu0 0.0
    %324 = vmatprep.subr.mxu0 0.0
    %325 = vmatpush1.msra.mxu0 0.0
    %326 = vmatprep.subr.mxu0 0.0
    %327 = vmatpush1.msra.mxu0 0.0
    %328 = vmatprep.subr.mxu0 0.0
    %329 = vmatpush1.msra.mxu0 0.0
    %330 = vmatprep.subr.mxu0 0.0
    %331 = vmatpush1.msra.mxu0 0.0
    %332 = vmatprep.subr.mxu0 0.0
    %333 = vmatpush1.msra.mxu0 0.0
    %334 = vmatprep.subr.mxu0 0.0
    %335 = vmatpush1.msra.mxu0 0.0
    %336 = vmatprep.subr.mxu0 0.0
    %337 = vmatpush1.msra.mxu0 0.0
    %338 = vmatprep.subr.mxu0 0.0
    %339 = vmatpush1.msra.mxu0 0.0
    %340 = vmatprep.subr.mxu0 0.0
    %341 = vmatpush1.msra.mxu0 0.0
    %342 = vmatprep.subr.mxu0 0.0
    %343 = vmatpush1.msra.mxu0 0.0
    %344 = vmatprep.subr.mxu0 0.0
    %345 = vmatpush1.msra.mxu0 0.0
    %346 = vmatprep.subr.mxu0 0.0
    %347 = vmatpush1.msra.mxu0 0.0
    %348 = vmatprep.subr.mxu0 0.0
    %349 = vmatpush1.msra.mxu0 0.0
    %350 = vmatprep.subr.mxu0 0.0
    %351 = vmatpush1.msra.mxu0 0.0
    %352 = vmatprep.subr.mxu0 0.0
    %353 = vmatpush1.msra.mxu0 0.0
    %354 = vmatprep.subr.mxu0 0.0
    %355 = vmatpush1.msra.mxu0 0.0
    %356 = vmatprep.subr.mxu0 0.0
    %357 = vmatpush1.msra.mxu0 0.0
    %358 = vmatprep.subr.mxu0 0.0
    %359 = vmatpush1.msra.mxu0 0.0
    %360 = vmatprep.subr.mxu0 0.0
    %361 = vmatpush1.msra.mxu0 0.0
    %362 = vmatprep.subr.mxu0 0.0
    %363 = vmatpush1.msra.mxu0 0.0
    %364 = vmatprep.subr.mxu0 0.0
    %365 = vmatpush1.msra.mxu0 0.0
    %366 = vmatprep.subr.mxu0 0.0
    %367 = vmatpush1.msra.mxu0 0.0
    %368 = vmatprep.subr.mxu0 0.0
    %369 = vmatpush1.msra.mxu0 0.0
    %370 = vmatprep.subr.mxu0 0.0
    %371 = vmatpush1.msra.mxu0 0.0
    %372 = vmatprep.subr.mxu0 0.0
    %373 = vmatpush1.msra.mxu0 0.0
    %374 = vmatprep.subr.mxu0 0.0
    %375 = vmatpush1.msra.mxu0 0.0
    %376 = vmatprep.mubr.f32.mxu0 0.0
    %377 = vmatmul.mubr.f32.gmra.mrb[0].mxu0 %v301
    %v378 = vpop.f32.mrb[0].mxu0
    %v379 = vadd.f32 %v285, %v378
    %v380 = vpop.f32.mrb[0].mxu0
    %v381 = vadd.f32 %v285, %v380
    %382 = vmatprep.mubr.f32.mxu0 0.0
    %383 = vmatmul.mubr.f32.gmra.mrb[0].mxu0 %v304
    %v384 = vpop.f32.mrb[0].mxu0
    %v385 = vadd.f32 %v289, %v384
    %v386 = vpop.f32.mrb[0].mxu0
    %v387 = vadd.f32 %v289, %v386
    %388 = vmatprep.mubr.f32.mxu0 0.0
    %389 = vmatmul.mubr.f32.gmra.mrb[0].mxu0 %v307
    %v390 = vpop.f32.mrb[0].mxu0
    %v391 = vadd.f32 %v293, %v390
    %v392 = vpop.f32.mrb[0].mxu0
    %v393 = vadd.f32 %v293, %v392
    %394 = vmatprep.mubr.f32.mxu0 0.0
    %395 = vmatmul.mubr.f32.gmra.mrb[0].mxu0 %v310
    %v396 = vpop.f32.mrb[0].mxu0
    %v397 = vadd.f32 %v297, %v396
    %v398 = vpop.f32.mrb[0].mxu0
    %v399 = vadd.f32 %v297, %v398
    %400 = vdwg.mxu0
    %v401 = vadd.f32 %v379, %v385
    %v402 = vadd.f32 %v401, %v391
    %v403 = vadd.f32 %v402, %v397
    %v404 = vrot.slane %v403, 4
    %v405 = vadd.f32 %v403, %v404
    %v406 = vrot.slane %v405, 2
    %v407 = vadd.f32 %v405, %v406
    %v408 = vrot.slane %v407, 1
    %v409 = vadd.f32 %v407, %v408
    %v410 = vadd.f32 %v381, %v387
    %v411 = vadd.f32 %v410, %v393
    %v412 = vadd.f32 %v411, %v399
    %v413 = vrot.slane %v412, 4
    %v414 = vadd.f32 %v412, %v413
    %v415 = vrot.slane %v414, 2
    %v416 = vadd.f32 %v414, %v415
    %v417 = vrot.slane %v416, 1
    %v418 = vadd.f32 %v416, %v417
    %v419 = vmul.f32 %v409, %v172
    %v420 = vmul.f32 %v418, %v172
    %v421 = vsub.f32 %v379, %v419
    %v422 = vsub.f32 %v381, %v420
    %v423 = vsub.f32 %v385, %v419
    %v424 = vsub.f32 %v387, %v420
    %v425 = vsub.f32 %v391, %v419
    %v426 = vsub.f32 %v393, %v420
    %v427 = vsub.f32 %v397, %v419
    %v428 = vsub.f32 %v399, %v420
    %v429 = vmul.f32 %v421, %v421
    %v430 = vmul.f32 %v422, %v422
    %v431 = vmul.f32 %v423, %v423
    %v432 = vmul.f32 %v424, %v424
    %v433 = vmul.f32 %v425, %v425
    %v434 = vmul.f32 %v426, %v426
    %v435 = vmul.f32 %v427, %v427
    %v436 = vmul.f32 %v428, %v428
    %v437 = vadd.f32 %v429, %v431
    %v438 = vadd.f32 %v437, %v433
    %v439 = vadd.f32 %v438, %v435
    %v440 = vrot.slane %v439, 4
    %v441 = vadd.f32 %v439, %v440
    %v442 = vrot.slane %v441, 2
    %v443 = vadd.f32 %v441, %v442
    %v444 = vrot.slane %v443, 1
    %v445 = vadd.f32 %v443, %v444
    %v446 = vadd.f32 %v430, %v432
    %v447 = vadd.f32 %v446, %v434
    %v448 = vadd.f32 %v447, %v436
    %v449 = vrot.slane %v448, 4
    %v450 = vadd.f32 %v448, %v449
    %v451 = vrot.slane %v450, 2
    %v452 = vadd.f32 %v450, %v451
    %v453 = vrot.slane %v452, 1
    %v454 = vadd.f32 %v452, %v453
    %v455 = vmul.f32 %v445, %v172
    %v456 = vmul.f32 %v454, %v172
    %v457 = vadd.f32 %v455, 1e-05
    %v458 = vadd.f32 %v456, 1e-05
    %v459 = vrsqrt.pop %v457
    %v460 = vrsqrt.pop %v458
    %v461 = vmul.f32 %v421, %v459
    %v462 = vmul.f32 %v422, %v460
    %v463 = vmul.f32 %v423, %v459
    %v464 = vmul.f32 %v424, %v460
    %v465 = vmul.f32 %v425, %v459
    %v466 = vmul.f32 %v426, %v460
    %v467 = vmul.f32 %v427, %v459
    %v468 = vmul.f32 %v428, %v460
    %469 = vset.pattern.permute.xlu0 4
    %470 = vperm.xlu0 %469, %v21
    %v471 = vpop.permute.xlu0 %470
    %473 = vset.pattern.permute.xlu0 4
    %474 = vperm.xlu0 %473, %v22
    %v475 = vpop.permute.xlu0 %474
    %477 = vset.pattern.permute.xlu0 4
    %478 = vperm.xlu0 %477, %v23
    %v479 = vpop.permute.xlu0 %478
    %481 = vset.pattern.permute.xlu0 4
    %482 = vperm.xlu0 %481, %v24
    %v483 = vpop.permute.xlu0 %482
    %v485 = vmul.f32 %v461, %v471
    %v486 = vmul.f32 %v462, %v471
    %v487 = vmul.f32 %v463, %v475
    %v488 = vmul.f32 %v464, %v475
    %v489 = vmul.f32 %v465, %v479
    %v490 = vmul.f32 %v466, %v479
    %v491 = vmul.f32 %v467, %v483
    %v492 = vmul.f32 %v468, %v483
    %493 = vset.pattern.permute.xlu0 5
    %494 = vperm.xlu0 %493, %v21
    %v495 = vpop.permute.xlu0 %494
    %497 = vset.pattern.permute.xlu0 5
    %498 = vperm.xlu0 %497, %v22
    %v499 = vpop.permute.xlu0 %498
    %501 = vset.pattern.permute.xlu0 5
    %502 = vperm.xlu0 %501, %v23
    %v503 = vpop.permute.xlu0 %502
    %505 = vset.pattern.permute.xlu0 5
    %506 = vperm.xlu0 %505, %v24
    %v507 = vpop.permute.xlu0 %506
    %v509 = vadd.f32 %v485, %v495
    %v510 = vadd.f32 %v486, %v495
    %v511 = vadd.f32 %v487, %v499
    %v512 = vadd.f32 %v488, %v499
    %v513 = vadd.f32 %v489, %v503
    %v514 = vadd.f32 %v490, %v503
    %v515 = vadd.f32 %v491, %v507
    %v516 = vadd.f32 %v492, %v507
    %v517 = vmax.f32 %v509, 0.0
    %v518 = vmax.f32 %v510, 0.0
    %v519 = vmax.f32 %v511, 0.0
    %v520 = vmax.f32 %v512, 0.0
    %v521 = vmax.f32 %v513, 0.0
    %v522 = vmax.f32 %v514, 0.0
    %v523 = vmax.f32 %v515, 0.0
    %v524 = vmax.f32 %v516, 0.0
    %v525 = vld [vmem:[%s3] sm:$0xf]
    %527 = vset.pattern.permute.xlu0 6
    %528 = vperm.xlu0 %527, %v25
    %v529 = vpop.permute.xlu0 %528
    %v532 = vsel %vm299, %v525, 0
    %534 = vmatprep.subr.mxu0 %v518
    %535 = vmatpush1.msra.mxu0 %v517
    %536 = vmatprep.subr.mxu0 %v520
    %537 = vmatpush1.msra.mxu0 %v519
    %538 = vmatprep.subr.mxu0 %v522
    %539 = vmatpush1.msra.mxu0 %v521
    %540 = vmatprep.subr.mxu0 %v524
    %541 = vmatpush1.msra.mxu0 %v523
    %542 = vmatprep.subr.mxu0 0.0
    %543 = vmatpush1.msra.mxu0 0.0
    %544 = vmatprep.subr.mxu0 0.0
    %545 = vmatpush1.msra.mxu0 0.0
    %546 = vmatprep.subr.mxu0 0.0
    %547 = vmatpush1.msra.mxu0 0.0
    %548 = vmatprep.subr.mxu0 0.0
    %549 = vmatpush1.msra.mxu0 0.0
    %550 = vmatprep.subr.mxu0 0.0
    %551 = vmatpush1.msra.mxu0 0.0
    %552 = vmatprep.subr.mxu0 0.0
    %553 = vmatpush1.msra.mxu0 0.0
    %554 = vmatprep.subr.mxu0 0.0
    %555 = vmatpush1.msra.mxu0 0.0
    %556 = vmatprep.subr.mxu0 0.0
    %557 = vmatpush1.msra.mxu0 0.0
    %558 = vmatprep.subr.mxu0 0.0
    %559 = vmatpush1.msra.mxu0 0.0
    %560 = vmatprep.subr.mxu0 0.0
    %561 = vmatpush1.msra.mxu0 0.0
    %562 = vmatprep.subr.mxu0 0.0
    %563 = vmatpush1.msra.mxu0 0.0
    %564 = vmatprep.subr.mxu0 0.0
    %565 = vmatpush1.msra.mxu0 0.0
    %566 = vmatprep.subr.mxu0 0.0
    %567 = vmatpush1.msra.mxu0 0.0
    %568 = vmatprep.subr.mxu0 0.0
    %569 = vmatpush1.msra.mxu0 0.0
    %570 = vmatprep.subr.mxu0 0.0
    %571 = vmatpush1.msra.mxu0 0.0
    %572 = vmatprep.subr.mxu0 0.0
    %573 = vmatpush1.msra.mxu0 0.0
    %574 = vmatprep.subr.mxu0 0.0
    %575 = vmatpush1.msra.mxu0 0.0
    %576 = vmatprep.subr.mxu0 0.0
    %577 = vmatpush1.msra.mxu0 0.0
    %578 = vmatprep.subr.mxu0 0.0
    %579 = vmatpush1.msra.mxu0 0.0
    %580 = vmatprep.subr.mxu0 0.0
    %581 = vmatpush1.msra.mxu0 0.0
    %582 = vmatprep.subr.mxu0 0.0
    %583 = vmatpush1.msra.mxu0 0.0
    %584 = vmatprep.subr.mxu0 0.0
    %585 = vmatpush1.msra.mxu0 0.0
    %586 = vmatprep.subr.mxu0 0.0
    %587 = vmatpush1.msra.mxu0 0.0
    %588 = vmatprep.subr.mxu0 0.0
    %589 = vmatpush1.msra.mxu0 0.0
    %590 = vmatprep.subr.mxu0 0.0
    %591 = vmatpush1.msra.mxu0 0.0
    %592 = vmatprep.subr.mxu0 0.0
    %593 = vmatpush1.msra.mxu0 0.0
    %594 = vmatprep.subr.mxu0 0.0
    %595 = vmatpush1.msra.mxu0 0.0
    %596 = vmatprep.subr.mxu0 0.0
    %597 = vmatpush1.msra.mxu0 0.0
    %598 = vmatprep.mubr.f32.mxu0 0.0
    %599 = vmatmul.mubr.f32.gmra.mrb[0].mxu0 %v532
    %v600 = vpop.f32.mrb[0].mxu0
    %v601 = vadd.f32 %v529, %v600
    %v602 = vpop.f32.mrb[0].mxu0
    %v603 = vadd.f32 %v529, %v602
    %604 = vdwg.mxu0
    %v605 = vxor.u32 %v601, 2147483648
    %v606 = vxor.u32 %v603, 2147483648
    %v607 = vmul.f32 %v605, 1.442695
    %v608 = vpow.pop %v607
    %v609 = vmul.f32 %v606, 1.442695
    %v610 = vpow.pop %v609
    %v611 = vadd.f32 %v608, 1.0
    %v612 = vadd.f32 %v610, 1.0
    %v613 = vrcp.pop %v611
    %v614 = vmul.f32 1.0, %v613
    %v615 = vrcp.pop %v612
    %v616 = vmul.f32 1.0, %v615
    %v619 = vcombine.low %v614, %v616
    %621 = vst [vmem:[#allocation2] sm:$0xff] %v619
    // Predicated region
    $region22: #{tpu_custom_call.1} parent=1 // pred_check
      _
    $region23: #{tpu_custom_call.1} parent=1 // pred_check_branch
      %623 = sbr.rel (0) target = $region25
    $region24: #{tpu_custom_call.1} parent=1 // pred_region
      %s625 = ssub.s32 128, 128
      %626 = vsyncadd [#allocation3], %s625
      %s628 = sshll.u32 [#allocation2], 4
      %s629 = int_to_ptr.vmem [resolvable:$true] %s628
      %631 = dma.vmem_to_hbm [thread:$0]  %s629, 128, %s5, [#allocation3]
    $region25: #{tpu_custom_call.1} parent=1 // pred_fallthru
      _
    // Predicated region
    $region26: #{tpu_custom_call.1} parent=1 // pred_check
      _
    $region27: #{tpu_custom_call.1} parent=1 // pred_check_branch
      %633 = sbr.rel (0) target = $region29
    $region28: #{tpu_custom_call.1} parent=1 // pred_region
      %634 = dma.done [#allocation3], 128
    $region29: #{tpu_custom_call.1} parent=1 // pred_fallthru
      _
    %635 = vsyncpa [#allocation3], 1

</llo_original>
